<compile_context>
chip_gen: v6e
topology: v6e:2x2x1
jax: 0.10.0
libtpu: 0.0.40
codegen_flags: <defaults>
</compile_context>

<pallas_src>
import jax
import jax.numpy as jnp
from jax.experimental import pallas as pl
from jax.experimental.pallas import tpu as pltpu


# ----------------------------------------------------------------------------------
# Kernel: one batch tile per grid step; all matmuls / ReLUs / softmax in VMEM.
# ----------------------------------------------------------------------------------
def _make_kernel(n_hidden, num_steps, out_pad):
    def kernel(*refs):
        # ref order:
        #   inp,
        #   [w_hidden_i, b_hidden_i] * n_hidden,
        #   w_out, b_out,
        #   w_oc_hidden, b_oc_hidden, w_oc, b_oc,
        #   preds_out (lane-padded to out_pad)
        idx = 0
        inp_ref = refs[idx]; idx += 1
        hidden = []
        for _ in range(n_hidden):
            hidden.append((refs[idx], refs[idx + 1]))
            idx += 2
        w_out, b_out = refs[idx], refs[idx + 1]; idx += 2
        w_och, b_och = refs[idx], refs[idx + 1]; idx += 2
        w_oc, b_oc = refs[idx], refs[idx + 1]; idx += 2
        preds_ref = refs[idx]

        x = inp_ref[...]
        bt = x.shape[0]

        def linear(a, w_ref, b_ref):
            return jnp.dot(a, w_ref[...], preferred_element_type=jnp.float32) + b_ref[...]

        def relu(z):
            return jnp.maximum(z, 0.0)

        def softmax(z):  # nn.Softmax(dim=1) on 2-D == softmax over last axis
            z = z - jnp.max(z, axis=1, keepdims=True)
            e = jnp.exp(z)
            return e * pl.reciprocal(jnp.sum(e, axis=1, keepdims=True), approx=True)

        # ---- occurrence branch: hidden_oc[0] -> ReLU -> output_oc -> softmax ----
        # 2-class softmax collapsed to a sigmoid of the logit difference (exact math).
        h_oc = relu(linear(x, w_och, b_och))
        z_oc = linear(h_oc, w_oc, b_oc)                       # (bt, 2)
        d = z_oc[:, 1:2] - z_oc[:, 0:1]                       # (bt, 1)
        p_occ1 = pl.reciprocal(1.0 + jnp.exp(-d), approx=True)
        p_occ0 = 1.0 - p_occ1

        # ---- main MLP: hidden[0], (ReLU, hidden[i])..., output ----
        out = linear(x, hidden[0][0], hidden[0][1])
        for i in range(1, n_hidden):
            out = linear(relu(out), hidden[i][0], hidden[i][1])
        out = linear(out, w_out, b_out)                       # (bt, num_steps)

        # ---- assemble preds directly into the lane-dense output block ----
        preds_ref[...] = jnp.zeros((bt, out_pad), jnp.float32)      # lane padding
        preds_ref[:, :num_steps] = softmax(out) * p_occ0
        preds_ref[:, num_steps:num_steps + 1] = p_occ1

    return kernel


# ----------------------------------------------------------------------------------
# Wrapper
# ----------------------------------------------------------------------------------
def proposed3_forward(inp, params, *, obs_only=True, pred_err=False,
                      marg_err_preds=False, block_b=512):
    """Pallas implementation of proposed3_net.forward (default flag path)."""
    assert not pred_err and not marg_err_preds, "only the default return path is implemented"
    B, num_feats = inp.shape
    num_steps = params["w_out"].shape[1]
    n_hidden = len(params["hidden"])
    layer_size = params["hidden"][0][0].shape[1]

    out_pad = 128                              # lane-dense output slab width
    b_tile = B if B <= block_b else block_b    # full-array block when batch is small
    grid = (pl.cdiv(B, b_tile),)

    args = [inp]
    for (w, b) in params["hidden"]:
        args += [w, b]
    args += [params["w_out"], params["b_out"],
             params["w_oc_hidden"], params["b_oc_hidden"],
             params["w_oc"], params["b_oc"]]

    def const_spec(arr):  # weights/biases: full block, same block every grid step
        return pl.BlockSpec(arr.shape, lambda i: (0, 0))

    in_specs = [pl.BlockSpec((b_tile, num_feats), lambda i: (i, 0))]
    in_specs += [const_spec(a) for a in args[1:]]
    out_specs = pl.BlockSpec((b_tile, out_pad), lambda i: (i, 0))

    # Advisory cost estimate for XLA's scheduler.
    flops = 2 * B * (2 * num_feats * layer_size                    # hidden[0] + hidden_oc
                     + (n_hidden - 1) * layer_size * layer_size    # hidden[1:]
                     + layer_size * num_steps                      # output
                     + layer_size * 2)                             # output_oc
    transcendentals = B * (num_steps + 2)                          # exps + sigmoid
    bytes_accessed = 4 * (int(inp.size) + sum(int(a.size) for a in args[1:]) + B * out_pad)

    preds_padded = pl.pallas_call(
        _make_kernel(n_hidden, num_steps, out_pad),
        out_shape=jax.ShapeDtypeStruct((B, out_pad), jnp.float32),
        grid=grid,
        in_specs=in_specs,
        out_specs=out_specs,
        compiler_params=pltpu.CompilerParams(
            dimension_semantics=("parallel",),        # megacore sharding on v7x
            vmem_limit_bytes=32 * 1024 * 1024,        # safe on v5e/v6e/v7x
        ),
        cost_estimate=pl.CostEstimate(
            flops=flops, transcendentals=transcendentals, bytes_accessed=bytes_accessed),
    )(*args)

    # default path of forward(): (obs_only or not train_final) and not marginalize_preds
    # -> return preds.  (gt_preds is dead on this path and is not computed.)
    return preds_padded[:, :num_steps + 1]


# ----------------------------------------------------------------------------------
# Parameter construction (deterministic, kaiming-uniform-like) + pure-JAX reference
# ----------------------------------------------------------------------------------
def init_params(key, num_feats, layer_size, num_steps, n_layer):
    def linear_init(key, fan_in, fan_out):
        kw, kb = jax.random.split(key)
        bound_w = (6.0 / fan_in) ** 0.5            # kaiming_uniform_ (gain sqrt(2))
        bound_b = 1.0 / (fan_in ** 0.5)            # default nn.Linear bias init
        w = jax.random.uniform(kw, (fan_in, fan_out), jnp.float32, -bound_w, bound_w)
        b = jax.random.uniform(kb, (1, fan_out), jnp.float32, -bound_b, bound_b)
        return w, b

    keys = jax.random.split(key, n_layer + 3)
    hidden = [linear_init(keys[0], num_feats, layer_size)]
    for i in range(1, n_layer):
        hidden.append(linear_init(keys[i], layer_size, layer_size))
    w_out, b_out = linear_init(keys[n_layer], layer_size, num_steps)
    w_oc_h, b_oc_h = linear_init(keys[n_layer + 1], num_feats, layer_size)
    w_oc, b_oc = linear_init(keys[n_layer + 2], layer_size, 2)
    return dict(hidden=hidden, w_out=w_out, b_out=b_out,
                w_oc_hidden=w_oc_h, b_oc_hidden=b_oc_h, w_oc=w_oc, b_oc=b_oc)


def reference_forward(inp, params):
    relu = lambda z: jnp.maximum(z, 0.0)
    softmax = lambda z: jax.nn.softmax(z, axis=1)
    lin = lambda a, w, b: a @ w + b

    h_oc = relu(lin(inp, params["w_oc_hidden"], params["b_oc_hidden"]))
    pred_occur = softmax(lin(h_oc, params["w_oc"], params["b_oc"]))

    out = lin(inp, *params["hidden"][0])
    for i in range(1, len(params["hidden"])):
        out = lin(relu(out), *params["hidden"][i])
    out = lin(out, params["w_out"], params["b_out"])

    preds = jnp.concatenate(
        [softmax(out) * pred_occur[:, 0:1], pred_occur[:, 1:2]], axis=1)
    return preds


if __name__ == "__main__":
    # small shapes consistent with the module
    B, num_feats, layer_size, num_steps, n_layer = 8, 16, 32, 8, 2

    key = jax.random.PRNGKey(0)
    k_params, k_inp = jax.random.split(key)
    params = init_params(k_params, num_feats, layer_size, num_steps, n_layer)
    inp = jax.random.normal(k_inp, (B, num_feats), dtype=jnp.float32)

    preds = jax.block_until_ready(proposed3_forward(inp, params))
    ref = reference_forward(inp, params)

    assert preds.shape == (B, num_steps + 1)
    # pl.reciprocal(approx=True) (EUP vrcp) loosens the match vs. exact-division JAX
    # reference; probabilities are in [0, 1] so an absolute tolerance is appropriate.
    assert jnp.allclose(preds, ref, atol=2e-2, rtol=0.0), "mismatch vs JAX reference"

    print("KERNEL_OK")
</pallas_src>

<mosaic_0001>
module attributes {stable_mosaic.version = 11 : i64} {
  func.func @kernel(%arg0: i32, %arg1: memref<8x16xf32, #tpu.memory_space<vmem>>, %arg2: memref<16x32xf32, #tpu.memory_space<vmem>>, %arg3: memref<1x32xf32, #tpu.memory_space<vmem>>, %arg4: memref<32x32xf32, #tpu.memory_space<vmem>>, %arg5: memref<1x32xf32, #tpu.memory_space<vmem>>, %arg6: memref<32x8xf32, #tpu.memory_space<vmem>>, %arg7: memref<1x8xf32, #tpu.memory_space<vmem>>, %arg8: memref<16x32xf32, #tpu.memory_space<vmem>>, %arg9: memref<1x32xf32, #tpu.memory_space<vmem>>, %arg10: memref<32x2xf32, #tpu.memory_space<vmem>>, %arg11: memref<1x2xf32, #tpu.memory_space<vmem>>, %arg12: memref<8x128xf32, #tpu.memory_space<vmem>>) attributes {dimension_semantics = [#tpu.dimension_semantics<parallel>], iteration_bounds = array<i64: 1>, scalar_prefetch = 0 : i64, scratch_operands = 0 : i64, tpu.core_type = #tpu.core_type<tc>, window_params = [{transform_indices = @transform_0, window_bounds = array<i64: 8, 16>}, {pipeline_mode = #tpu.pipeline_mode<synchronous>, transform_indices = @transform_1, window_bounds = array<i64: 16, 32>}, {pipeline_mode = #tpu.pipeline_mode<synchronous>, transform_indices = @transform_2, window_bounds = array<i64: 1, 32>}, {pipeline_mode = #tpu.pipeline_mode<synchronous>, transform_indices = @transform_3, window_bounds = array<i64: 32, 32>}, {pipeline_mode = #tpu.pipeline_mode<synchronous>, transform_indices = @transform_4, window_bounds = array<i64: 1, 32>}, {pipeline_mode = #tpu.pipeline_mode<synchronous>, transform_indices = @transform_5, window_bounds = array<i64: 32, 8>}, {pipeline_mode = #tpu.pipeline_mode<synchronous>, transform_indices = @transform_6, window_bounds = array<i64: 1, 8>}, {pipeline_mode = #tpu.pipeline_mode<synchronous>, transform_indices = @transform_7, window_bounds = array<i64: 16, 32>}, {pipeline_mode = #tpu.pipeline_mode<synchronous>, transform_indices = @transform_8, window_bounds = array<i64: 1, 32>}, {pipeline_mode = #tpu.pipeline_mode<synchronous>, transform_indices = @transform_9, window_bounds = array<i64: 32, 2>}, {pipeline_mode = #tpu.pipeline_mode<synchronous>, transform_indices = @transform_10, window_bounds = array<i64: 1, 2>}, {transform_indices = @transform_11, window_bounds = array<i64: 8, 128>}]} {
    %c0 = arith.constant 0 : index
    %c0_0 = arith.constant 0 : index
    %0 = vector.load %arg1[%c0, %c0_0] : memref<8x16xf32, #tpu.memory_space<vmem>>, vector<8x16xf32>
    %c0_1 = arith.constant 0 : index
    %c0_2 = arith.constant 0 : index
    %1 = vector.load %arg8[%c0_1, %c0_2] : memref<16x32xf32, #tpu.memory_space<vmem>>, vector<16x32xf32>
    %cst = arith.constant dense<0.000000e+00> : vector<8x32xf32>
    %2 = tpu.matmul %0, %1, %cst {dimension_numbers = #tpu.dot_dimension_numbers<[1], [0], [0], [1], [0, 0, 1, 1], [], []>} : vector<8x16xf32>, vector<16x32xf32>, vector<8x32xf32> -> vector<8x32xf32>
    %c0_3 = arith.constant 0 : index
    %c0_4 = arith.constant 0 : index
    %3 = vector.load %arg9[%c0_3, %c0_4] : memref<1x32xf32, #tpu.memory_space<vmem>>, vector<1x32xf32>
    %4 = vector.broadcast %3 : vector<1x32xf32> to vector<8x32xf32>
    %5 = arith.addf %2, %4 : vector<8x32xf32>
    %cst_5 = arith.constant 0.000000e+00 : f32
    %6 = vector.broadcast %cst_5 : f32 to vector<8x32xf32>
    %7 = arith.maximumf %5, %6 : vector<8x32xf32>
    %c0_6 = arith.constant 0 : index
    %c0_7 = arith.constant 0 : index
    %8 = vector.load %arg10[%c0_6, %c0_7] : memref<32x2xf32, #tpu.memory_space<vmem>>, vector<32x2xf32>
    %cst_8 = arith.constant dense<0.000000e+00> : vector<8x2xf32>
    %9 = tpu.matmul %7, %8, %cst_8 {dimension_numbers = #tpu.dot_dimension_numbers<[1], [0], [0], [1], [0, 0, 1, 1], [], []>} : vector<8x32xf32>, vector<32x2xf32>, vector<8x2xf32> -> vector<8x2xf32>
    %c0_9 = arith.constant 0 : index
    %c0_10 = arith.constant 0 : index
    %10 = vector.load %arg11[%c0_9, %c0_10] : memref<1x2xf32, #tpu.memory_space<vmem>>, vector<1x2xf32>
    %11 = vector.broadcast %10 : vector<1x2xf32> to vector<8x2xf32>
    %12 = arith.addf %9, %11 : vector<8x2xf32>
    %13 = vector.extract_strided_slice %12 {offsets = [0, 1], sizes = [8, 1], strides = [1, 1]} : vector<8x2xf32> to vector<8x1xf32>
    %14 = vector.extract_strided_slice %12 {offsets = [0, 0], sizes = [8, 1], strides = [1, 1]} : vector<8x2xf32> to vector<8x1xf32>
    %15 = arith.subf %13, %14 : vector<8x1xf32>
    %cst_11 = arith.constant 0.000000e+00 : f32
    %16 = vector.broadcast %cst_11 : f32 to vector<8x1xf32>
    %17 = arith.subf %16, %15 : vector<8x1xf32>
    %18 = math.exp %17 : vector<8x1xf32>
    %cst_12 = arith.constant 1.000000e+00 : f32
    %19 = vector.broadcast %cst_12 : f32 to vector<8x1xf32>
    %20 = arith.addf %19, %18 : vector<8x1xf32>
    %21 = tpu.reciprocal %20 {approx = true} : vector<8x1xf32> -> vector<8x1xf32>
    %cst_13 = arith.constant 1.000000e+00 : f32
    %22 = vector.broadcast %cst_13 : f32 to vector<8x1xf32>
    %23 = arith.subf %22, %21 : vector<8x1xf32>
    %c0_14 = arith.constant 0 : index
    %c0_15 = arith.constant 0 : index
    %24 = vector.load %arg2[%c0_14, %c0_15] : memref<16x32xf32, #tpu.memory_space<vmem>>, vector<16x32xf32>
    %cst_16 = arith.constant dense<0.000000e+00> : vector<8x32xf32>
    %25 = tpu.matmul %0, %24, %cst_16 {dimension_numbers = #tpu.dot_dimension_numbers<[1], [0], [0], [1], [0, 0, 1, 1], [], []>} : vector<8x16xf32>, vector<16x32xf32>, vector<8x32xf32> -> vector<8x32xf32>
    %c0_17 = arith.constant 0 : index
    %c0_18 = arith.constant 0 : index
    %26 = vector.load %arg3[%c0_17, %c0_18] : memref<1x32xf32, #tpu.memory_space<vmem>>, vector<1x32xf32>
    %27 = vector.broadcast %26 : vector<1x32xf32> to vector<8x32xf32>
    %28 = arith.addf %25, %27 : vector<8x32xf32>
    %cst_19 = arith.constant 0.000000e+00 : f32
    %29 = vector.broadcast %cst_19 : f32 to vector<8x32xf32>
    %30 = arith.maximumf %28, %29 : vector<8x32xf32>
    %c0_20 = arith.constant 0 : index
    %c0_21 = arith.constant 0 : index
    %31 = vector.load %arg4[%c0_20, %c0_21] : memref<32x32xf32, #tpu.memory_space<vmem>>, vector<32x32xf32>
    %cst_22 = arith.constant dense<0.000000e+00> : vector<8x32xf32>
    %32 = tpu.matmul %30, %31, %cst_22 {dimension_numbers = #tpu.dot_dimension_numbers<[1], [0], [0], [1], [0, 0, 1, 1], [], []>} : vector<8x32xf32>, vector<32x32xf32>, vector<8x32xf32> -> vector<8x32xf32>
    %c0_23 = arith.constant 0 : index
    %c0_24 = arith.constant 0 : index
    %33 = vector.load %arg5[%c0_23, %c0_24] : memref<1x32xf32, #tpu.memory_space<vmem>>, vector<1x32xf32>
    %34 = vector.broadcast %33 : vector<1x32xf32> to vector<8x32xf32>
    %35 = arith.addf %32, %34 : vector<8x32xf32>
    %c0_25 = arith.constant 0 : index
    %c0_26 = arith.constant 0 : index
    %36 = vector.load %arg6[%c0_25, %c0_26] : memref<32x8xf32, #tpu.memory_space<vmem>>, vector<32x8xf32>
    %cst_27 = arith.constant dense<0.000000e+00> : vector<8x8xf32>
    %37 = tpu.matmul %35, %36, %cst_27 {dimension_numbers = #tpu.dot_dimension_numbers<[1], [0], [0], [1], [0, 0, 1, 1], [], []>} : vector<8x32xf32>, vector<32x8xf32>, vector<8x8xf32> -> vector<8x8xf32>
    %c0_28 = arith.constant 0 : index
    %c0_29 = arith.constant 0 : index
    %38 = vector.load %arg7[%c0_28, %c0_29] : memref<1x8xf32, #tpu.memory_space<vmem>>, vector<1x8xf32>
    %39 = vector.broadcast %38 : vector<1x8xf32> to vector<8x8xf32>
    %40 = arith.addf %37, %39 : vector<8x8xf32>
    %cst_30 = arith.constant 0.000000e+00 : f32
    %41 = vector.broadcast %cst_30 : f32 to vector<8x128xf32>
    %c0_31 = arith.constant 0 : index
    %c0_32 = arith.constant 0 : index
    %42 = vector.load %arg12[%c0_31, %c0_32] : memref<8x128xf32, #tpu.memory_space<vmem>>, vector<8x128xf32>
    tpu.vector_store %arg12[%c0_31, %c0_32], %41 {strides = array<i32>} : memref<8x128xf32, #tpu.memory_space<vmem>>, vector<8x128xf32>,
    %cst_33 = arith.constant dense<0xFF800000> : vector<8xf32>
    %43 = vector.multi_reduction <maximumf>, %40, %cst_33 [1] : vector<8x8xf32> to vector<8xf32>
    %44 = vector.shape_cast %43 : vector<8xf32> to vector<8x1xf32>
    %45 = vector.broadcast %44 : vector<8x1xf32> to vector<8x8xf32>
    %46 = arith.subf %40, %45 : vector<8x8xf32>
    %47 = math.exp %46 : vector<8x8xf32>
    %cst_34 = arith.constant dense<0.000000e+00> : vector<8xf32>
    %48 = vector.multi_reduction <add>, %47, %cst_34 [1] : vector<8x8xf32> to vector<8xf32>
    %49 = vector.shape_cast %48 : vector<8xf32> to vector<8x1xf32>
    %50 = tpu.reciprocal %49 {approx = true} : vector<8x1xf32> -> vector<8x1xf32>
    %51 = vector.broadcast %50 : vector<8x1xf32> to vector<8x8xf32>
    %52 = arith.mulf %47, %51 : vector<8x8xf32>
    %53 = vector.broadcast %23 : vector<8x1xf32> to vector<8x8xf32>
    %54 = arith.mulf %52, %53 : vector<8x8xf32>
    %c0_35 = arith.constant 0 : index
    %c0_36 = arith.constant 0 : index
    %55 = vector.load %arg12[%c0_35, %c0_36] : memref<8x128xf32, #tpu.memory_space<vmem>>, vector<8x8xf32>
    tpu.vector_store %arg12[%c0_35, %c0_36], %54 {strides = array<i32>} : memref<8x128xf32, #tpu.memory_space<vmem>>, vector<8x8xf32>,
    %c0_37 = arith.constant 0 : index
    %c8 = arith.constant 8 : index
    %56 = vector.load %arg12[%c0_37, %c8] : memref<8x128xf32, #tpu.memory_space<vmem>>, vector<8x1xf32>
    tpu.vector_store %arg12[%c0_37, %c8], %21 {strides = array<i32>} : memref<8x128xf32, #tpu.memory_space<vmem>>, vector<8x1xf32>,
    return
  }
  func.func @transform_0(%arg0: i32) -> (i32, i32) {
    %c0_i32 = arith.constant 0 : i32
    %c0_i32_0 = arith.constant 0 : i32
    return %arg0, %c0_i32 : i32, i32
  }
  func.func @transform_1(%arg0: i32) -> (i32, i32) {
    %c0_i32 = arith.constant 0 : i32
    %c0_i32_0 = arith.constant 0 : i32
    %c0_i32_1 = arith.constant 0 : i32
    return %c0_i32, %c0_i32_0 : i32, i32
  }
  func.func @transform_2(%arg0: i32) -> (i32, i32) {
    %c0_i32 = arith.constant 0 : i32
    %c0_i32_0 = arith.constant 0 : i32
    %c0_i32_1 = arith.constant 0 : i32
    return %c0_i32, %c0_i32_0 : i32, i32
  }
  func.func @transform_3(%arg0: i32) -> (i32, i32) {
    %c0_i32 = arith.constant 0 : i32
    %c0_i32_0 = arith.constant 0 : i32
    %c0_i32_1 = arith.constant 0 : i32
    return %c0_i32, %c0_i32_0 : i32, i32
  }
  func.func @transform_4(%arg0: i32) -> (i32, i32) {
    %c0_i32 = arith.constant 0 : i32
    %c0_i32_0 = arith.constant 0 : i32
    %c0_i32_1 = arith.constant 0 : i32
    return %c0_i32, %c0_i32_0 : i32, i32
  }
  func.func @transform_5(%arg0: i32) -> (i32, i32) {
    %c0_i32 = arith.constant 0 : i32
    %c0_i32_0 = arith.constant 0 : i32
    %c0_i32_1 = arith.constant 0 : i32
    return %c0_i32, %c0_i32_0 : i32, i32
  }
  func.func @transform_6(%arg0: i32) -> (i32, i32) {
    %c0_i32 = arith.constant 0 : i32
    %c0_i32_0 = arith.constant 0 : i32
    %c0_i32_1 = arith.constant 0 : i32
    return %c0_i32, %c0_i32_0 : i32, i32
  }
  func.func @transform_7(%arg0: i32) -> (i32, i32) {
    %c0_i32 = arith.constant 0 : i32
    %c0_i32_0 = arith.constant 0 : i32
    %c0_i32_1 = arith.constant 0 : i32
    return %c0_i32, %c0_i32_0 : i32, i32
  }
  func.func @transform_8(%arg0: i32) -> (i32, i32) {
    %c0_i32 = arith.constant 0 : i32
    %c0_i32_0 = arith.constant 0 : i32
    %c0_i32_1 = arith.constant 0 : i32
    return %c0_i32, %c0_i32_0 : i32, i32
  }
  func.func @transform_9(%arg0: i32) -> (i32, i32) {
    %c0_i32 = arith.constant 0 : i32
    %c0_i32_0 = arith.constant 0 : i32
    %c0_i32_1 = arith.constant 0 : i32
    return %c0_i32, %c0_i32_0 : i32, i32
  }
  func.func @transform_10(%arg0: i32) -> (i32, i32) {
    %c0_i32 = arith.constant 0 : i32
    %c0_i32_0 = arith.constant 0 : i32
    %c0_i32_1 = arith.constant 0 : i32
    return %c0_i32, %c0_i32_0 : i32, i32
  }
  func.func @transform_11(%arg0: i32) -> (i32, i32) {
    %c0_i32 = arith.constant 0 : i32
    %c0_i32_0 = arith.constant 0 : i32
    return %arg0, %c0_i32 : i32, i32
  }
}

</mosaic_0001>

<llo_original>
// kernel: tpu_custom_call.1
$region0: #{tpu_custom_call.1}
  #allocation0 [shape = 'u32[]', space=smem, size = 0x4, offset = 0x4, fixed_abs, tag = 'smem constant byte address 0x4 - core index']
  #allocation1 [shape = 'u32[144,128]{1,0:T(1,128)}', space=vmem, size = 0x12000, scoped, tag = 'internal scratch']
  %s0 = inlined_call_operand.vmem [shape: f32[8,16], index: 0, kind: input, shape index: {}]
  %s1 = inlined_call_operand.vmem [shape: f32[16,32], index: 1, kind: input, shape index: {}]
  %s2 = inlined_call_operand.vmem [shape: f32[1,32], index: 2, kind: input, shape index: {}]
  %s3 = inlined_call_operand.vmem [shape: f32[32,32], index: 3, kind: input, shape index: {}]
  %s4 = inlined_call_operand.hbm [shape: f32[1,32], index: 4, kind: input, shape index: {}]
  %s5 = inlined_call_operand.vmem [shape: f32[32,8], index: 5, kind: input, shape index: {}]
  %s6 = inlined_call_operand.vmem [shape: f32[1,8], index: 6, kind: input, shape index: {}]
  %s7 = inlined_call_operand.vmem [shape: f32[16,32], index: 7, kind: input, shape index: {}]
  %s8 = inlined_call_operand.vmem [shape: f32[1,32], index: 8, kind: input, shape index: {}]
  %s9 = inlined_call_operand.vmem [shape: f32[32,2], index: 9, kind: input, shape index: {}]
  %s10 = inlined_call_operand.vmem [shape: f32[1,2], index: 10, kind: input, shape index: {}]
  %s11 = inlined_call_operand.hbm [shape: f32[8,128], index: 11, kind: output, shape index: {}]
  %s12 = sld [smem:[#allocation0]]
  $region58: #{tpu_custom_call.1} parent=0
    _
  %s14 = ssub.s32 1, %s12
  %s15 = scalar_select 0, %s14, %s12
  $region1: #{tpu_custom_call.1} parent=0
    #allocation2 [shape = 'u8[512]{0}', space=vmem, size = 0x400, scoped, tag = 'input window, operand 4, single buffered']
    #allocation3 [shape = 's32[1]{0}', space=sflag, size = 0x4, scoped, tag = 'scoped memory for tpu_custom_call.1']
    #allocation4 [shape = 's32[1]{0}', space=sflag, size = 0x4, scoped, tag = 'scoped memory for tpu_custom_call.1']
    #allocation5 [shape = 'u8[4096]{0}', space=vmem, size = 0x1000, scoped, tag = 'output window, operand 0, single buffered']
    %16 = vsyncpa [#allocation3], 0
    %17 = vsyncpa [#allocation4], 0
    // Predicated region
    $region2: #{tpu_custom_call.1} parent=1 // pred_check
      _
    $region3: #{tpu_custom_call.1} parent=1 // pred_check_branch
      %19 = sbr.rel (0) target = $region5
    $region4: #{tpu_custom_call.1} parent=1 // pred_region
      _
    $region5: #{tpu_custom_call.1} parent=1 // pred_fallthru
      _
    // Predicated region
    $region6: #{tpu_custom_call.1} parent=1 // pred_check
      _
    $region7: #{tpu_custom_call.1} parent=1 // pred_check_branch
      %21 = sbr.rel (0) target = $region9
    $region8: #{tpu_custom_call.1} parent=1 // pred_region
      _
    $region9: #{tpu_custom_call.1} parent=1 // pred_fallthru
      _
    // Predicated region
    $region10: #{tpu_custom_call.1} parent=1 // pred_check
      _
    $region11: #{tpu_custom_call.1} parent=1 // pred_check_branch
      %23 = sbr.rel (0) target = $region13
    $region12: #{tpu_custom_call.1} parent=1 // pred_region
      _
    $region13: #{tpu_custom_call.1} parent=1 // pred_fallthru
      _
    // Predicated region
    $region14: #{tpu_custom_call.1} parent=1 // pred_check
      _
    $region15: #{tpu_custom_call.1} parent=1 // pred_check_branch
      %25 = sbr.rel (0) target = $region17
    $region16: #{tpu_custom_call.1} parent=1 // pred_region
      _
    $region17: #{tpu_custom_call.1} parent=1 // pred_fallthru
      _
    // Predicated region
    $region18: #{tpu_custom_call.1} parent=1 // pred_check
      _
    $region19: #{tpu_custom_call.1} parent=1 // pred_check_branch
      %27 = sbr.rel (0) target = $region21
    $region20: #{tpu_custom_call.1} parent=1 // pred_region
      %s29 = ssub.s32 16, 16
      %30 = vsyncadd [#allocation3], %s29
      %s32 = sshll.u32 [#allocation2], 4
      %s33 = int_to_ptr.vmem [resolvable:$true] %s32
      %35 = dma.hbm_to_vmem [thread:$0]  %s4, 16, %s33, [#allocation3]
    $region21: #{tpu_custom_call.1} parent=1 // pred_fallthru
      _
    // Predicated region
    $region22: #{tpu_custom_call.1} parent=1 // pred_check
      _
    $region23: #{tpu_custom_call.1} parent=1 // pred_check_branch
      %37 = sbr.rel (0) target = $region25
    $region24: #{tpu_custom_call.1} parent=1 // pred_region
      _
    $region25: #{tpu_custom_call.1} parent=1 // pred_fallthru
      _
    // Predicated region
    $region26: #{tpu_custom_call.1} parent=1 // pred_check
      _
    $region27: #{tpu_custom_call.1} parent=1 // pred_check_branch
      %39 = sbr.rel (0) target = $region29
    $region28: #{tpu_custom_call.1} parent=1 // pred_region
      _
    $region29: #{tpu_custom_call.1} parent=1 // pred_fallthru
      _
    // Predicated region
    $region30: #{tpu_custom_call.1} parent=1 // pred_check
      _
    $region31: #{tpu_custom_call.1} parent=1 // pred_check_branch
      %41 = sbr.rel (0) target = $region33
    $region32: #{tpu_custom_call.1} parent=1 // pred_region
      _
    $region33: #{tpu_custom_call.1} parent=1 // pred_fallthru
      _
    // Predicated region
    $region34: #{tpu_custom_call.1} parent=1 // pred_check
      _
    $region35: #{tpu_custom_call.1} parent=1 // pred_check_branch
      %43 = sbr.rel (0) target = $region37
    $region36: #{tpu_custom_call.1} parent=1 // pred_region
      _
    $region37: #{tpu_custom_call.1} parent=1 // pred_fallthru
      _
    // Predicated region
    $region38: #{tpu_custom_call.1} parent=1 // pred_check
      _
    $region39: #{tpu_custom_call.1} parent=1 // pred_check_branch
      %45 = sbr.rel (0) target = $region41
    $region40: #{tpu_custom_call.1} parent=1 // pred_region
      _
    $region41: #{tpu_custom_call.1} parent=1 // pred_fallthru
      _
    // Predicated region
    $region42: #{tpu_custom_call.1} parent=1 // pred_check
      _
    $region43: #{tpu_custom_call.1} parent=1 // pred_check_branch
      %47 = sbr.rel (0) target = $region45
    $region44: #{tpu_custom_call.1} parent=1 // pred_region
      _
    $region45: #{tpu_custom_call.1} parent=1 // pred_fallthru
      _
    // Predicated region
    $region46: #{tpu_custom_call.1} parent=1 // pred_check
      _
    $region47: #{tpu_custom_call.1} parent=1 // pred_check_branch
      %49 = sbr.rel (0) target = $region49
    $region48: #{tpu_custom_call.1} parent=1 // pred_region
      %50 = dma.done [#allocation3], 16
    $region49: #{tpu_custom_call.1} parent=1 // pred_fallthru
      _
    %v51 = vld [vmem:[%s0] sm:$0xff]
    %v52 = vld [vmem:[%s7] sm:$0xff]
    %v53 = vld [vmem:[%s7 + $0x8] sm:$0xff]
    %v54 = vld [vmem:[%s8] sm:$0x1]
    %v56 = vlaneseq
    %v57 = vshrl.u32 %v56, 7
    %v58 = vsub.s32 0, %v57
    %v59 = vrot.slane %v54, %v58
    %vm61 = vcmask 130048
    %v63 = vsel %vm61, %v51, 0
    %65 = vmatprep.subr.mxu0 0.0
    %66 = vmatpush1.msra.mxu0 0.0
    %67 = vmatprep.subr.mxu0 0.0
    %68 = vmatpush1.msra.mxu0 0.0
    %69 = vmatprep.subr.mxu0 0.0
    %70 = vmatpush1.msra.mxu0 0.0
    %71 = vmatprep.subr.mxu0 0.0
    %72 = vmatpush1.msra.mxu0 0.0
    %73 = vmatprep.subr.mxu0 0.0
    %74 = vmatpush1.msra.mxu0 0.0
    %75 = vmatprep.subr.mxu0 0.0
    %76 = vmatpush1.msra.mxu0 0.0
    %77 = vmatprep.subr.mxu0 0.0
    %78 = vmatpush1.msra.mxu0 0.0
    %79 = vmatprep.subr.mxu0 0.0
    %80 = vmatpush1.msra.mxu0 0.0
    %81 = vmatprep.subr.mxu0 0.0
    %82 = vmatpush1.msra.mxu0 0.0
    %83 = vmatprep.subr.mxu0 0.0
    %84 = vmatpush1.msra.mxu0 0.0
    %85 = vmatprep.subr.mxu0 0.0
    %86 = vmatpush1.msra.mxu0 0.0
    %87 = vmatprep.subr.mxu0 0.0
    %88 = vmatpush1.msra.mxu0 0.0
    %89 = vmatprep.subr.mxu0 0.0
    %90 = vmatpush1.msra.mxu0 0.0
    %91 = vmatprep.subr.mxu0 0.0
    %92 = vmatpush1.msra.mxu0 0.0
    %93 = vmatprep.subr.mxu0 0.0
    %94 = vmatpush1.msra.mxu0 %v53
    %95 = vmatprep.subr.mxu0 0.0
    %96 = vmatpush1.msra.mxu0 %v52
    %97 = vmatprep.subr.mxu0 0.0
    %98 = vmatpush2.msra.mxu0 0.0
    %99 = vmatprep.subr.mxu0 0.0
    %100 = vmatpush2.msra.mxu0 0.0
    %101 = vmatprep.subr.mxu0 0.0
    %102 = vmatpush2.msra.mxu0 0.0
    %103 = vmatprep.subr.mxu0 0.0
    %104 = vmatpush2.msra.mxu0 0.0
    %105 = vmatprep.subr.mxu0 0.0
    %106 = vmatpush2.msra.mxu0 0.0
    %107 = vmatprep.subr.mxu0 0.0
    %108 = vmatpush2.msra.mxu0 0.0
    %109 = vmatprep.subr.mxu0 0.0
    %110 = vmatpush2.msra.mxu0 0.0
    %111 = vmatprep.subr.mxu0 0.0
    %112 = vmatpush2.msra.mxu0 0.0
    %113 = vmatprep.subr.mxu0 0.0
    %114 = vmatpush2.msra.mxu0 0.0
    %115 = vmatprep.subr.mxu0 0.0
    %116 = vmatpush2.msra.mxu0 0.0
    %117 = vmatprep.subr.mxu0 0.0
    %118 = vmatpush2.msra.mxu0 0.0
    %119 = vmatprep.subr.mxu0 0.0
    %120 = vmatpush2.msra.mxu0 0.0
    %121 = vmatprep.subr.mxu0 0.0
    %122 = vmatpush2.msra.mxu0 0.0
    %123 = vmatprep.subr.mxu0 0.0
    %124 = vmatpush2.msra.mxu0 0.0
    %125 = vmatprep.subr.mxu0 0.0
    %126 = vmatpush2.msra.mxu0 0.0
    %127 = vmatprep.subr.mxu0 0.0
    %128 = vmatpush2.msra.mxu0 0.0
    %129 = vmatprep.mubr.f32.mxu0 0.0
    %130 = vmatmul.mubr.f32.gmra.mxu0 %v63
    %v131 = vpop.f32.mrf.mxu0
    %v132 = vadd.f32 %v59, %v131
    %v133 = vpop.f32.mrf.mxu0
    %134 = vdwg.mxu0
    %v135 = vmax.f32 %v132, 0.0
    %v136 = vld [vmem:[%s9] sm:$0xff]
    %v137 = vld [vmem:[%s9 + $0x8] sm:$0xff]
    %v138 = vld [vmem:[%s9 + $0x10] sm:$0xff]
    %v139 = vld [vmem:[%s9 + $0x18] sm:$0xff]
    %v140 = vld [vmem:[%s10] sm:$0x1]
    %v142 = vlaneseq
    %v143 = vshrl.u32 %v142, 7
    %v144 = vsub.s32 0, %v143
    %v145 = vrot.slane %v140, %v144
    %vm147 = vcmask 261120
    %v149 = vsel %vm147, %v135, 0
    %151 = vmatprep.subr.mxu0 0.0
    %152 = vmatpush1.msra.mxu0 0.0
    %153 = vmatprep.subr.mxu0 0.0
    %154 = vmatpush1.msra.mxu0 0.0
    %155 = vmatprep.subr.mxu0 0.0
    %156 = vmatpush1.msra.mxu0 0.0
    %157 = vmatprep.subr.mxu0 0.0
    %158 = vmatpush1.msra.mxu0 0.0
    %159 = vmatprep.subr.mxu0 0.0
    %160 = vmatpush1.msra.mxu0 0.0
    %161 = vmatprep.subr.mxu0 0.0
    %162 = vmatpush1.msra.mxu0 0.0
    %163 = vmatprep.subr.mxu0 0.0
    %164 = vmatpush1.msra.mxu0 0.0
    %165 = vmatprep.subr.mxu0 0.0
    %166 = vmatpush1.msra.mxu0 0.0
    %167 = vmatprep.subr.mxu0 0.0
    %168 = vmatpush1.msra.mxu0 0.0
    %169 = vmatprep.subr.mxu0 0.0
    %170 = vmatpush1.msra.mxu0 0.0
    %171 = vmatprep.subr.mxu0 0.0
    %172 = vmatpush1.msra.mxu0 0.0
    %173 = vmatprep.subr.mxu0 0.0
    %174 = vmatpush1.msra.mxu0 0.0
    %175 = vmatprep.subr.mxu0 0.0
    %176 = vmatpush1.msra.mxu0 %v139
    %177 = vmatprep.subr.mxu0 0.0
    %178 = vmatpush1.msra.mxu0 %v138
    %179 = vmatprep.subr.mxu0 0.0
    %180 = vmatpush1.msra.mxu0 %v137
    %181 = vmatprep.subr.mxu0 0.0
    %182 = vmatpush1.msra.mxu0 %v136
    %183 = vmatprep.subr.mxu0 0.0
    %184 = vmatpush2.msra.mxu0 0.0
    %185 = vmatprep.subr.mxu0 0.0
    %186 = vmatpush2.msra.mxu0 0.0
    %187 = vmatprep.subr.mxu0 0.0
    %188 = vmatpush2.msra.mxu0 0.0
    %189 = vmatprep.subr.mxu0 0.0
    %190 = vmatpush2.msra.mxu0 0.0
    %191 = vmatprep.subr.mxu0 0.0
    %192 = vmatpush2.msra.mxu0 0.0
    %193 = vmatprep.subr.mxu0 0.0
    %194 = vmatpush2.msra.mxu0 0.0
    %195 = vmatprep.subr.mxu0 0.0
    %196 = vmatpush2.msra.mxu0 0.0
    %197 = vmatprep.subr.mxu0 0.0
    %198 = vmatpush2.msra.mxu0 0.0
    %199 = vmatprep.subr.mxu0 0.0
    %200 = vmatpush2.msra.mxu0 0.0
    %201 = vmatprep.subr.mxu0 0.0
    %202 = vmatpush2.msra.mxu0 0.0
    %203 = vmatprep.subr.mxu0 0.0
    %204 = vmatpush2.msra.mxu0 0.0
    %205 = vmatprep.subr.mxu0 0.0
    %206 = vmatpush2.msra.mxu0 0.0
    %207 = vmatprep.subr.mxu0 0.0
    %208 = vmatpush2.msra.mxu0 0.0
    %209 = vmatprep.subr.mxu0 0.0
    %210 = vmatpush2.msra.mxu0 0.0
    %211 = vmatprep.subr.mxu0 0.0
    %212 = vmatpush2.msra.mxu0 0.0
    %213 = vmatprep.subr.mxu0 0.0
    %214 = vmatpush2.msra.mxu0 0.0
    %215 = vmatprep.mubr.f32.mxu0 0.0
    %216 = vmatmul.mubr.f32.gmra.mxu0 %v149
    %v217 = vpop.f32.mrf.mxu0
    %v218 = vadd.f32 %v145, %v217
    %v219 = vpop.f32.mrf.mxu0
    %220 = vdwg.mxu0
    %222 = vrot.lane.b32.xlu0 %v218, 1
    %v223 = vpop.permute.xlu0 %222
    %v225 = vsub.f32 %v218, %v223
    %v226 = vsub.f32 0.0, %v225
    %v227 = vmul.f32 %v226, 1.442695
    %v228 = vpow.pop %v227
    %v229 = vadd.f32 %v228, 1.0
    %v230 = vrcp.pop %v229
    %v231 = vsub.f32 1.0, %v230
    %v232 = vld [vmem:[%s1] sm:$0xff]
    %v233 = vld [vmem:[%s1 + $0x8] sm:$0xff]
    %v234 = vld [vmem:[%s2] sm:$0x1]
    %v236 = vlaneseq
    %v237 = vshrl.u32 %v236, 7
    %v238 = vsub.s32 0, %v237
    %v239 = vrot.slane %v234, %v238
    %241 = vmatprep.subr.mxu0 0.0
    %242 = vmatpush1.msra.mxu0 0.0
    %243 = vmatprep.subr.mxu0 0.0
    %244 = vmatpush1.msra.mxu0 0.0
    %245 = vmatprep.subr.mxu0 0.0
    %246 = vmatpush1.msra.mxu0 0.0
    %247 = vmatprep.subr.mxu0 0.0
    %248 = vmatpush1.msra.mxu0 0.0
    %249 = vmatprep.subr.mxu0 0.0
    %250 = vmatpush1.msra.mxu0 0.0
    %251 = vmatprep.subr.mxu0 0.0
    %252 = vmatpush1.msra.mxu0 0.0
    %253 = vmatprep.subr.mxu0 0.0
    %254 = vmatpush1.msra.mxu0 0.0
    %255 = vmatprep.subr.mxu0 0.0
    %256 = vmatpush1.msra.mxu0 0.0
    %257 = vmatprep.subr.mxu0 0.0
    %258 = vmatpush1.msra.mxu0 0.0
    %259 = vmatprep.subr.mxu0 0.0
    %260 = vmatpush1.msra.mxu0 0.0
    %261 = vmatprep.subr.mxu0 0.0
    %262 = vmatpush1.msra.mxu0 0.0
    %263 = vmatprep.subr.mxu0 0.0
    %264 = vmatpush1.msra.mxu0 0.0
    %265 = vmatprep.subr.mxu0 0.0
    %266 = vmatpush1.msra.mxu0 0.0
    %267 = vmatprep.subr.mxu0 0.0
    %268 = vmatpush1.msra.mxu0 0.0
    %269 = vmatprep.subr.mxu0 0.0
    %270 = vmatpush1.msra.mxu0 %v233
    %271 = vmatprep.subr.mxu0 0.0
    %272 = vmatpush1.msra.mxu0 %v232
    %273 = vmatprep.subr.mxu0 0.0
    %274 = vmatpush2.msra.mxu0 0.0
    %275 = vmatprep.subr.mxu0 0.0
    %276 = vmatpush2.msra.mxu0 0.0
    %277 = vmatprep.subr.mxu0 0.0
    %278 = vmatpush2.msra.mxu0 0.0
    %279 = vmatprep.subr.mxu0 0.0
    %280 = vmatpush2.msra.mxu0 0.0
    %281 = vmatprep.subr.mxu0 0.0
    %282 = vmatpush2.msra.mxu0 0.0
    %283 = vmatprep.subr.mxu0 0.0
    %284 = vmatpush2.msra.mxu0 0.0
    %285 = vmatprep.subr.mxu0 0.0
    %286 = vmatpush2.msra.mxu0 0.0
    %287 = vmatprep.subr.mxu0 0.0
    %288 = vmatpush2.msra.mxu0 0.0
    %289 = vmatprep.subr.mxu0 0.0
    %290 = vmatpush2.msra.mxu0 0.0
    %291 = vmatprep.subr.mxu0 0.0
    %292 = vmatpush2.msra.mxu0 0.0
    %293 = vmatprep.subr.mxu0 0.0
    %294 = vmatpush2.msra.mxu0 0.0
    %295 = vmatprep.subr.mxu0 0.0
    %296 = vmatpush2.msra.mxu0 0.0
    %297 = vmatprep.subr.mxu0 0.0
    %298 = vmatpush2.msra.mxu0 0.0
    %299 = vmatprep.subr.mxu0 0.0
    %300 = vmatpush2.msra.mxu0 0.0
    %301 = vmatprep.subr.mxu0 0.0
    %302 = vmatpush2.msra.mxu0 0.0
    %303 = vmatprep.subr.mxu0 0.0
    %304 = vmatpush2.msra.mxu0 0.0
    %305 = vmatprep.mubr.f32.mxu0 0.0
    %306 = vmatmul.mubr.f32.gmra.mxu0 %v63
    %v307 = vpop.f32.mrf.mxu0
    %v308 = vadd.f32 %v239, %v307
    %v309 = vpop.f32.mrf.mxu0
    %310 = vdwg.mxu0
    %v311 = vmax.f32 %v308, 0.0
    %v312 = vld [vmem:[%s3] sm:$0xff]
    %v313 = vld [vmem:[%s3 + $0x8] sm:$0xff]
    %v314 = vld [vmem:[%s3 + $0x10] sm:$0xff]
    %v315 = vld [vmem:[%s3 + $0x18] sm:$0xff]
    %v316 = vld [vmem:[#allocation2] sm:$0x1]
    %v318 = vlaneseq
    %v319 = vshrl.u32 %v318, 7
    %v320 = vsub.s32 0, %v319
    %v321 = vrot.slane %v316, %v320
    %v324 = vsel %vm147, %v311, 0
    %326 = vmatprep.subr.mxu0 0.0
    %327 = vmatpush1.msra.mxu0 0.0
    %328 = vmatprep.subr.mxu0 0.0
    %329 = vmatpush1.msra.mxu0 0.0
    %330 = vmatprep.subr.mxu0 0.0
    %331 = vmatpush1.msra.mxu0 0.0
    %332 = vmatprep.subr.mxu0 0.0
    %333 = vmatpush1.msra.mxu0 0.0
    %334 = vmatprep.subr.mxu0 0.0
    %335 = vmatpush1.msra.mxu0 0.0
    %336 = vmatprep.subr.mxu0 0.0
    %337 = vmatpush1.msra.mxu0 0.0
    %338 = vmatprep.subr.mxu0 0.0
    %339 = vmatpush1.msra.mxu0 0.0
    %340 = vmatprep.subr.mxu0 0.0
    %341 = vmatpush1.msra.mxu0 0.0
    %342 = vmatprep.subr.mxu0 0.0
    %343 = vmatpush1.msra.mxu0 0.0
    %344 = vmatprep.subr.mxu0 0.0
    %345 = vmatpush1.msra.mxu0 0.0
    %346 = vmatprep.subr.mxu0 0.0
    %347 = vmatpush1.msra.mxu0 0.0
    %348 = vmatprep.subr.mxu0 0.0
    %349 = vmatpush1.msra.mxu0 0.0
    %350 = vmatprep.subr.mxu0 0.0
    %351 = vmatpush1.msra.mxu0 %v315
    %352 = vmatprep.subr.mxu0 0.0
    %353 = vmatpush1.msra.mxu0 %v314
    %354 = vmatprep.subr.mxu0 0.0
    %355 = vmatpush1.msra.mxu0 %v313
    %356 = vmatprep.subr.mxu0 0.0
    %357 = vmatpush1.msra.mxu0 %v312
    %358 = vmatprep.subr.mxu0 0.0
    %359 = vmatpush2.msra.mxu0 0.0
    %360 = vmatprep.subr.mxu0 0.0
    %361 = vmatpush2.msra.mxu0 0.0
    %362 = vmatprep.subr.mxu0 0.0
    %363 = vmatpush2.msra.mxu0 0.0
    %364 = vmatprep.subr.mxu0 0.0
    %365 = vmatpush2.msra.mxu0 0.0
    %366 = vmatprep.subr.mxu0 0.0
    %367 = vmatpush2.msra.mxu0 0.0
    %368 = vmatprep.subr.mxu0 0.0
    %369 = vmatpush2.msra.mxu0 0.0
    %370 = vmatprep.subr.mxu0 0.0
    %371 = vmatpush2.msra.mxu0 0.0
    %372 = vmatprep.subr.mxu0 0.0
    %373 = vmatpush2.msra.mxu0 0.0
    %374 = vmatprep.subr.mxu0 0.0
    %375 = vmatpush2.msra.mxu0 0.0
    %376 = vmatprep.subr.mxu0 0.0
    %377 = vmatpush2.msra.mxu0 0.0
    %378 = vmatprep.subr.mxu0 0.0
    %379 = vmatpush2.msra.mxu0 0.0
    %380 = vmatprep.subr.mxu0 0.0
    %381 = vmatpush2.msra.mxu0 0.0
    %382 = vmatprep.subr.mxu0 0.0
    %383 = vmatpush2.msra.mxu0 0.0
    %384 = vmatprep.subr.mxu0 0.0
    %385 = vmatpush2.msra.mxu0 0.0
    %386 = vmatprep.subr.mxu0 0.0
    %387 = vmatpush2.msra.mxu0 0.0
    %388 = vmatprep.subr.mxu0 0.0
    %389 = vmatpush2.msra.mxu0 0.0
    %390 = vmatprep.mubr.f32.mxu0 0.0
    %391 = vmatmul.mubr.f32.gmra.mxu0 %v324
    %v392 = vpop.f32.mrf.mxu0
    %v393 = vadd.f32 %v321, %v392
    %v394 = vpop.f32.mrf.mxu0
    %395 = vdwg.mxu0
    %v396 = vld [vmem:[%s5] sm:$0xff]
    %v397 = vld [vmem:[%s5 + $0x8] sm:$0xff]
    %v398 = vld [vmem:[%s5 + $0x10] sm:$0xff]
    %v399 = vld [vmem:[%s5 + $0x18] sm:$0xff]
    %v400 = vld [vmem:[%s6] sm:$0x1]
    %v402 = vlaneseq
    %v403 = vshrl.u32 %v402, 7
    %v404 = vsub.s32 0, %v403
    %v405 = vrot.slane %v400, %v404
    %v408 = vsel %vm147, %v393, 0
    %410 = vmatprep.subr.mxu0 0.0
    %411 = vmatpush1.msra.mxu0 0.0
    %412 = vmatprep.subr.mxu0 0.0
    %413 = vmatpush1.msra.mxu0 0.0
    %414 = vmatprep.subr.mxu0 0.0
    %415 = vmatpush1.msra.mxu0 0.0
    %416 = vmatprep.subr.mxu0 0.0
    %417 = vmatpush1.msra.mxu0 0.0
    %418 = vmatprep.subr.mxu0 0.0
    %419 = vmatpush1.msra.mxu0 0.0
    %420 = vmatprep.subr.mxu0 0.0
    %421 = vmatpush1.msra.mxu0 0.0
    %422 = vmatprep.subr.mxu0 0.0
    %423 = vmatpush1.msra.mxu0 0.0
    %424 = vmatprep.subr.mxu0 0.0
    %425 = vmatpush1.msra.mxu0 0.0
    %426 = vmatprep.subr.mxu0 0.0
    %427 = vmatpush1.msra.mxu0 0.0
    %428 = vmatprep.subr.mxu0 0.0
    %429 = vmatpush1.msra.mxu0 0.0
    %430 = vmatprep.subr.mxu0 0.0
    %431 = vmatpush1.msra.mxu0 0.0
    %432 = vmatprep.subr.mxu0 0.0
    %433 = vmatpush1.msra.mxu0 0.0
    %434 = vmatprep.subr.mxu0 0.0
    %435 = vmatpush1.msra.mxu0 %v399
    %436 = vmatprep.subr.mxu0 0.0
    %437 = vmatpush1.msra.mxu0 %v398
    %438 = vmatprep.subr.mxu0 0.0
    %439 = vmatpush1.msra.mxu0 %v397
    %440 = vmatprep.subr.mxu0 0.0
    %441 = vmatpush1.msra.mxu0 %v396
    %442 = vmatprep.subr.mxu0 0.0
    %443 = vmatpush2.msra.mxu0 0.0
    %444 = vmatprep.subr.mxu0 0.0
    %445 = vmatpush2.msra.mxu0 0.0
    %446 = vmatprep.subr.mxu0 0.0
    %447 = vmatpush2.msra.mxu0 0.0
    %448 = vmatprep.subr.mxu0 0.0
    %449 = vmatpush2.msra.mxu0 0.0
    %450 = vmatprep.subr.mxu0 0.0
    %451 = vmatpush2.msra.mxu0 0.0
    %452 = vmatprep.subr.mxu0 0.0
    %453 = vmatpush2.msra.mxu0 0.0
    %454 = vmatprep.subr.mxu0 0.0
    %455 = vmatpush2.msra.mxu0 0.0
    %456 = vmatprep.subr.mxu0 0.0
    %457 = vmatpush2.msra.mxu0 0.0
    %458 = vmatprep.subr.mxu0 0.0
    %459 = vmatpush2.msra.mxu0 0.0
    %460 = vmatprep.subr.mxu0 0.0
    %461 = vmatpush2.msra.mxu0 0.0
    %462 = vmatprep.subr.mxu0 0.0
    %463 = vmatpush2.msra.mxu0 0.0
    %464 = vmatprep.subr.mxu0 0.0
    %465 = vmatpush2.msra.mxu0 0.0
    %466 = vmatprep.subr.mxu0 0.0
    %467 = vmatpush2.msra.mxu0 0.0
    %468 = vmatprep.subr.mxu0 0.0
    %469 = vmatpush2.msra.mxu0 0.0
    %470 = vmatprep.subr.mxu0 0.0
    %471 = vmatpush2.msra.mxu0 0.0
    %472 = vmatprep.subr.mxu0 0.0
    %473 = vmatpush2.msra.mxu0 0.0
    %474 = vmatprep.mubr.f32.mxu0 0.0
    %475 = vmatmul.mubr.f32.gmra.mxu0 %v408
    %v476 = vpop.f32.mrf.mxu0
    %v477 = vadd.f32 %v405, %v476
    %v478 = vpop.f32.mrf.mxu0
    %479 = vdwg.mxu0
    %480 = vst [vmem:[#allocation5] sm:$0xff] 0.0
    %vm481 = vcmask 64512
    %v482 = vsel %vm481, %v477, -inf
    %483 = vmax.xlane.f32.xlu0 %v482
    %v484 = vpop.xlane.xlu0 %483
    %v485 = vsub.f32 %v477, %v484
    %v486 = vmul.f32 %v485, 1.442695
    %v487 = vpow.pop %v486
    %v488 = vsel %vm481, %v487, 0.0
    %489 = vadd.xlane.f32.xlu0 %v488
    %v490 = vpop.xlane.xlu0 %489
    %v491 = vrcp.pop %v490
    %v492 = vmul.f32 %v487, %v491
    %494 = vset.pattern.permute.xlu0 1
    %495 = vperm.xlu0 %494, %v231
    %v496 = vpop.permute.xlu0 %495
    %v498 = vmul.f32 %v492, %v496
    %499 = vst.msk [vmem:[#allocation5] sm:$0xff] %vm481, %v498
    %501 = vrot.lane.b32.xlu0 %v230, 7
    %v502 = vpop.permute.xlu0 %501
    %vm504 = vcmask 72768
    %505 = vst.msk [vmem:[#allocation5] sm:$0xff] %vm504, %v502
    // Predicated region
    $region50: #{tpu_custom_call.1} parent=1 // pred_check
      _
    $region51: #{tpu_custom_call.1} parent=1 // pred_check_branch
      %507 = sbr.rel (0) target = $region53
    $region52: #{tpu_custom_call.1} parent=1 // pred_region
      %s509 = ssub.s32 128, 128
      %510 = vsyncadd [#allocation4], %s509
      %s512 = sshll.u32 [#allocation5], 4
      %s513 = int_to_ptr.vmem [resolvable:$true] %s512
      %515 = dma.vmem_to_hbm [thread:$0]  %s513, 128, %s11, [#allocation4]
    $region53: #{tpu_custom_call.1} parent=1 // pred_fallthru
      _
    // Predicated region
    $region54: #{tpu_custom_call.1} parent=1 // pred_check
      _
    $region55: #{tpu_custom_call.1} parent=1 // pred_check_branch
      %517 = sbr.rel (0) target = $region57
    $region56: #{tpu_custom_call.1} parent=1 // pred_region
      %518 = dma.done [#allocation4], 128
    $region57: #{tpu_custom_call.1} parent=1 // pred_fallthru
      _
    %519 = vsyncpa [#allocation3], 1
    %520 = vsyncpa [#allocation4], 1

</llo_original>
